<compile_context>
chip_gen: v7x
topology: tpu7x:2x2x1
jax: 0.10.0
libtpu: 0.0.40
codegen_flags: <defaults>
</compile_context>

<pallas_src>
import jax
import jax.numpy as jnp
from jax.experimental import pallas as pl
from jax.experimental.pallas import tpu as pltpu


_SMALL_C_MAX = 32  # VPU scalar-FMA path threshold (raised per review; sweepable)


def _round_up(x, m):
    return ((x + m - 1) // m) * m


# --------------------------------------------------------------------------
# Kernel bodies
# --------------------------------------------------------------------------
def _channel_reduce(r_ref):
    """R block (Bb, C, N, N), native dtype -> list of per-channel rows.

    Returns xs where xs[c] (Bb, N) f32 with
      xs[c][b, k] = sum_n R[b, c, n, k] * relu(tanh(max_c' R[b, c', k, n]))

    Loops over C so the peak live temporary is one (Bb, N, N) f32 slab
    (attention matrix) plus one channel slab, not a second block-sized tensor.
    """
    _, C, _, _ = r_ref.shape

    # Channel max, one native-dtype slab at a time.
    mx = r_ref[:, 0, :, :]
    for c in range(1, C):
        mx = jnp.maximum(mx, r_ref[:, c, :, :])

    # A[b, k, n] = relu(tanh(mx[b, k, n]));  At[b, n, k] = A[b, k, n].
    # (Optional bf16 A on v6e/v7x not taken: keeps numerics identical to ref.)
    A = jnp.maximum(jnp.tanh(mx.astype(jnp.float32)), 0.0)
    At = jnp.transpose(A, (0, 2, 1))                        # (Bb, N, N) f32

    # x[b, c, k] = sum_n R[b, c, n, k] * At[b, n, k]; cast per channel slab.
    xs = []
    for c in range(C):
        Rc = r_ref[:, c, :, :].astype(jnp.float32)           # (Bb, N, N)
        xs.append(jnp.sum(Rc * At, axis=1))                  # (Bb, N)
    return xs


def _graph_op_kernel_vpu(r_ref, w_ref, b_ref, o_ref):
    # r_ref: (Bb, C, N, N) native dtype VMEM
    # w_ref: (C, C) f32 SMEM,  b_ref: (C,) f32 SMEM
    # o_ref: (Bb, 1, C*N) VMEM  (lane-dense flattened output)
    _, C, _, _ = r_ref.shape
    xs = _channel_reduce(r_ref)

    # Channel linear as VPU broadcast-FMA with scalars straight from SMEM:
    # for small/mid C a padded 128/256-wide MXU tile would be <6% utilized.
    rows = []
    for co in range(C):
        acc = xs[0] * w_ref[co, 0]
        for ci in range(1, C):
            acc = acc + xs[ci] * w_ref[co, ci]
        rows.append(acc + b_ref[co])

    # Lane-concatenate the C rows -> (Bb, C*N): no sublane re-pack, and a
    # single wide store instead of C masked 16-lane stores.
    Fg = jnp.concatenate(rows, axis=-1)
    o_ref[:, 0, :] = Fg.astype(o_ref.dtype)


def _graph_op_kernel_mxu(r_ref, w_ref, b_ref, o_ref):
    # Path for larger C (> _SMALL_C_MAX): one batched matmul on the MXU.
    # r_ref: (Bb, C, N, N) VMEM; w_ref: (C, C) f32 VMEM; b_ref: (C, 1) f32 VMEM
    # o_ref: (Bb, 1, C*N) VMEM
    Bb, C, N, _ = r_ref.shape
    xs = _channel_reduce(r_ref)

    # Single (C, C) @ (C, Bb*N) matmul (lane-dense RHS/out) instead of Bb tiny
    # per-batch matmuls each paying MXU push/pop overhead + padding waste.
    x2d = jnp.stack(xs, axis=0).reshape(C, Bb * N)            # x2d[c, b*N+k]
    Fg2d = jnp.dot(w_ref[...], x2d, preferred_element_type=jnp.float32)
    Fg2d = Fg2d + b_ref[...]                                  # (C, Bb*N)

    Fg = jnp.transpose(Fg2d.reshape(C, Bb, N), (1, 0, 2)).reshape(Bb, C * N)
    o_ref[:, 0, :] = Fg.astype(o_ref.dtype)


# --------------------------------------------------------------------------
# Block-size / VMEM-limit selection (generation-aware)
# --------------------------------------------------------------------------
def _tpu_info():
    """(per-core VMEM capacity bytes, has-multiple-TensorCores-per-chip)."""
    vmem_cap = 64 << 20          # conservative default (v7x-sized)
    try:
        vmem_cap = int(pltpu.get_tpu_info().vmem_capacity_bytes)
    except Exception:
        pass
    multi_tc = True              # conservative default
    try:
        kind = jax.devices()[0].device_kind.lower()
        # v5e ("v5 lite") and v6e have a single TensorCore per chip.
        if ("v5" in kind) or ("v6" in kind) or ("lite" in kind):
            multi_tc = False
    except Exception:
        pass
    return vmem_cap, multi_tc


def _pick_block_and_limits(B, C, N, r_itemsize):
    """Batch elements per grid step + vmem_limit_bytes."""
    vmem_cap, multi_tc = _tpu_info()
    big_vmem = vmem_cap >= (96 << 20)          # v5e/v6e: 128 MiB; v7x: 64 MiB

    # Per-grid-step VMEM budget (double-buffered R block + f32 working slabs).
    step_budget = (40 << 20) if big_vmem else (20 << 20)
    vmem_limit = (96 << 20) if big_vmem else (48 << 20)

    n_sub = _round_up(N, 8)
    n_lane = _round_up(N, 128)
    per_batch_r = C * n_sub * n_lane * r_itemsize    # VMEM-padded R block / batch
    per_batch_tmp = 2 * n_sub * n_lane * 4           # At + one channel slab (f32)
    per_batch = 2 * per_batch_r + per_batch_tmp      # 2x: input double-buffering

    bb = max(1, min(B, step_budget // max(per_batch, 1)))

    # Multi-TC chips (v7x): force >=2 grid steps only when each half-block is
    # still large enough (>= ~4 MiB of R) to amortize the extra pipeline step.
    # Single-TC chips (v5e/v6e): never split beyond what VMEM requires.
    if multi_tc and bb == B and B >= 2:
        half = pl.cdiv(B, 2)
        if half * per_batch_r >= (4 << 20):
            bb = half

    # Very large N can overflow the budget even at bb=1; raise the limit
    # toward physical capacity so the single oversized block still compiles.
    # TODO(synk): tile the k (last) axis (second R spec slicing dim 2 for the
    # channel-max, first spec slicing dim 3 for the reduce) for very large N.
    if per_batch > step_budget:
        vmem_limit = max(vmem_limit,
                         min(vmem_cap - (8 << 20), per_batch + (8 << 20)))

    return int(bb), int(vmem_limit)


# --------------------------------------------------------------------------
# Wrapper
# --------------------------------------------------------------------------
def graph_operation(R, W, bias):
    """R: (B, C, N, N); W: (C, C); bias: (C,). Returns (B, C, N, 1)."""
    B, C, N, N2 = R.shape
    assert N == N2 and W.shape == (C, C) and bias.shape == (C,)

    # Keep R in its native dtype through the HBM->VMEM DMA (op is HBM-bound);
    # casting to f32 happens per-channel inside the kernel. W/bias are tiny.
    out_dtype = R.dtype
    W32 = W.astype(jnp.float32)
    b32 = bias.astype(jnp.float32)

    bb, vmem_limit = _pick_block_and_limits(B, C, N, R.dtype.itemsize)
    grid = (pl.cdiv(B, bb),)

    r_spec = pl.BlockSpec((bb, C, N, N), lambda b: (b, 0, 0, 0))
    # Flattened (B, 1, C*N) output: lane-dense store in the kernel; the
    # reshape back to (B, C, N, 1) happens in the wrapper (layout plumbing).
    o_spec = pl.BlockSpec((bb, 1, C * N), lambda b: (b, 0, 0))

    if C <= _SMALL_C_MAX:
        kernel = _graph_op_kernel_vpu
        w_arg, b_arg = W32, b32
        w_spec = pl.BlockSpec(memory_space=pltpu.MemorySpace.SMEM)
        b_spec = pl.BlockSpec(memory_space=pltpu.MemorySpace.SMEM)
    else:
        kernel = _graph_op_kernel_mxu
        w_arg, b_arg = W32, b32.reshape(C, 1)
        w_spec = pl.BlockSpec((C, C), lambda b: (0, 0))
        b_spec = pl.BlockSpec((C, 1), lambda b: (0, 0))

    r_bytes = int(R.size) * R.dtype.itemsize
    cost = pl.CostEstimate(
        flops=int(B * (C * N * N          # channel-max compares
                       + N * N            # relu
                       + 2 * C * N * N    # weighted reduce (mul + add)
                       + 2 * C * C * N)), # channel linear
        transcendentals=int(B * N * N),   # tanh
        bytes_accessed=int(r_bytes + W32.size * 4 + b32.size * 4
                           + B * C * N * jnp.dtype(out_dtype).itemsize),
    )

    out_flat = pl.pallas_call(
        kernel,
        out_shape=jax.ShapeDtypeStruct((B, 1, C * N), out_dtype),
        grid_spec=pltpu.PrefetchScalarGridSpec(
            num_scalar_prefetch=0,
            grid=grid,
            in_specs=[r_spec, w_spec, b_spec],
            out_specs=o_spec,
        ),
        compiler_params=pltpu.CompilerParams(
            dimension_semantics=("parallel",),
            vmem_limit_bytes=vmem_limit,
        ),
        cost_estimate=cost,
    )(R, w_arg, b_arg)

    return out_flat.reshape(B, C, N)[..., None]


# --------------------------------------------------------------------------
# Pure-JAX reference
# --------------------------------------------------------------------------
def graph_operation_ref(R, W, bias):
    mx = jnp.max(R, axis=1)                           # (B, N, N)
    A = jax.nn.relu(jnp.tanh(mx))                     # (B, N, N)
    x = jnp.einsum('bcnk,bkn->bck', R, A)             # (B, C, N)
    Fg = jnp.einsum('oc,bck->bok', W, x) + bias[None, :, None]
    return Fg[..., None]                              # (B, C, N, 1)


if __name__ == "__main__":
    # Small shapes consistent with the module: b=2, c=in_dim=4, n=num_points=16
    B, C, N = 2, 4, 16
    key = jax.random.PRNGKey(0)
    k_r, k_w, k_b = jax.random.split(key, 3)

    R = jax.random.normal(k_r, (B, C, N, N), dtype=jnp.float32)
    bound = 1.0 / float(jnp.sqrt(jnp.float32(C)))
    W = jax.random.uniform(k_w, (C, C), jnp.float32, -bound, bound)
    bias = jax.random.uniform(k_b, (C,), jnp.float32, -bound, bound)

    out = jax.block_until_ready(graph_operation(R, W, bias))
    ref = graph_operation_ref(R, W, bias)

    assert out.shape == (B, C, N, 1)
    assert jnp.allclose(out, ref, atol=1e-5, rtol=1e-5), float(
        jnp.max(jnp.abs(out - ref))
    )

    print("KERNEL_OK")
</pallas_src>

<mosaic_0001>
module attributes {stable_mosaic.version = 11 : i64} {
  func.func @_graph_op_kernel_vpu(%arg0: i32, %arg1: memref<2x4x16x16xf32, #tpu.memory_space<vmem>>, %arg2: memref<4x4xf32, #tpu.memory_space<smem>>, %arg3: memref<4xf32, #tpu.memory_space<smem>>, %arg4: memref<2x1x64xf32, #tpu.memory_space<vmem>>) attributes {dimension_semantics = [#tpu.dimension_semantics<parallel>], iteration_bounds = array<i64: 1>, scalar_prefetch = 0 : i64, scratch_operands = 0 : i64, tpu.core_type = #tpu.core_type<tc>, window_params = [{transform_indices = @transform_0, window_bounds = array<i64: 2, 4, 16, 16>}, {transform_indices = @transform_1, window_bounds = array<i64: 4, 4>}, {transform_indices = @transform_2, window_bounds = array<i64: 4>}, {transform_indices = @transform_3, window_bounds = array<i64: 2, 1, 64>}]} {
    %c0 = arith.constant 0 : index
    %c0_0 = arith.constant 0 : index
    %c0_1 = arith.constant 0 : index
    %c0_2 = arith.constant 0 : index
    %0 = vector.load %arg1[%c0, %c0_0, %c0_1, %c0_2] : memref<2x4x16x16xf32, #tpu.memory_space<vmem>>, vector<2x1x16x16xf32>
    %1 = vector.shape_cast %0 : vector<2x1x16x16xf32> to vector<2x16x16xf32>
    %c0_3 = arith.constant 0 : index
    %c1 = arith.constant 1 : index
    %c0_4 = arith.constant 0 : index
    %c0_5 = arith.constant 0 : index
    %2 = vector.load %arg1[%c0_3, %c1, %c0_4, %c0_5] : memref<2x4x16x16xf32, #tpu.memory_space<vmem>>, vector<2x1x16x16xf32>
    %3 = vector.shape_cast %2 : vector<2x1x16x16xf32> to vector<2x16x16xf32>
    %4 = arith.maximumf %1, %3 : vector<2x16x16xf32>
    %c0_6 = arith.constant 0 : index
    %c2 = arith.constant 2 : index
    %c0_7 = arith.constant 0 : index
    %c0_8 = arith.constant 0 : index
    %5 = vector.load %arg1[%c0_6, %c2, %c0_7, %c0_8] : memref<2x4x16x16xf32, #tpu.memory_space<vmem>>, vector<2x1x16x16xf32>
    %6 = vector.shape_cast %5 : vector<2x1x16x16xf32> to vector<2x16x16xf32>
    %7 = arith.maximumf %4, %6 : vector<2x16x16xf32>
    %c0_9 = arith.constant 0 : index
    %c3 = arith.constant 3 : index
    %c0_10 = arith.constant 0 : index
    %c0_11 = arith.constant 0 : index
    %8 = vector.load %arg1[%c0_9, %c3, %c0_10, %c0_11] : memref<2x4x16x16xf32, #tpu.memory_space<vmem>>, vector<2x1x16x16xf32>
    %9 = vector.shape_cast %8 : vector<2x1x16x16xf32> to vector<2x16x16xf32>
    %10 = arith.maximumf %7, %9 : vector<2x16x16xf32>
    %11 = math.tanh %10 : vector<2x16x16xf32>
    %cst = arith.constant 0.000000e+00 : f32
    %12 = vector.broadcast %cst : f32 to vector<2x16x16xf32>
    %13 = arith.maximumf %11, %12 : vector<2x16x16xf32>
    %14 = tpu.transpose %13, [0, 2, 1] : vector<2x16x16xf32> -> vector<2x16x16xf32>
    %c0_12 = arith.constant 0 : index
    %c0_13 = arith.constant 0 : index
    %c0_14 = arith.constant 0 : index
    %c0_15 = arith.constant 0 : index
    %15 = vector.load %arg1[%c0_12, %c0_13, %c0_14, %c0_15] : memref<2x4x16x16xf32, #tpu.memory_space<vmem>>, vector<2x1x16x16xf32>
    %16 = vector.shape_cast %15 : vector<2x1x16x16xf32> to vector<2x16x16xf32>
    %17 = arith.mulf %16, %14 : vector<2x16x16xf32>
    %cst_16 = arith.constant dense<0.000000e+00> : vector<2x16xf32>
    %18 = vector.multi_reduction <add>, %17, %cst_16 [1] : vector<2x16x16xf32> to vector<2x16xf32>
    %c0_17 = arith.constant 0 : index
    %c1_18 = arith.constant 1 : index
    %c0_19 = arith.constant 0 : index
    %c0_20 = arith.constant 0 : index
    %19 = vector.load %arg1[%c0_17, %c1_18, %c0_19, %c0_20] : memref<2x4x16x16xf32, #tpu.memory_space<vmem>>, vector<2x1x16x16xf32>
    %20 = vector.shape_cast %19 : vector<2x1x16x16xf32> to vector<2x16x16xf32>
    %21 = arith.mulf %20, %14 : vector<2x16x16xf32>
    %cst_21 = arith.constant dense<0.000000e+00> : vector<2x16xf32>
    %22 = vector.multi_reduction <add>, %21, %cst_21 [1] : vector<2x16x16xf32> to vector<2x16xf32>
    %c0_22 = arith.constant 0 : index
    %c2_23 = arith.constant 2 : index
    %c0_24 = arith.constant 0 : index
    %c0_25 = arith.constant 0 : index
    %23 = vector.load %arg1[%c0_22, %c2_23, %c0_24, %c0_25] : memref<2x4x16x16xf32, #tpu.memory_space<vmem>>, vector<2x1x16x16xf32>
    %24 = vector.shape_cast %23 : vector<2x1x16x16xf32> to vector<2x16x16xf32>
    %25 = arith.mulf %24, %14 : vector<2x16x16xf32>
    %cst_26 = arith.constant dense<0.000000e+00> : vector<2x16xf32>
    %26 = vector.multi_reduction <add>, %25, %cst_26 [1] : vector<2x16x16xf32> to vector<2x16xf32>
    %c0_27 = arith.constant 0 : index
    %c3_28 = arith.constant 3 : index
    %c0_29 = arith.constant 0 : index
    %c0_30 = arith.constant 0 : index
    %27 = vector.load %arg1[%c0_27, %c3_28, %c0_29, %c0_30] : memref<2x4x16x16xf32, #tpu.memory_space<vmem>>, vector<2x1x16x16xf32>
    %28 = vector.shape_cast %27 : vector<2x1x16x16xf32> to vector<2x16x16xf32>
    %29 = arith.mulf %28, %14 : vector<2x16x16xf32>
    %cst_31 = arith.constant dense<0.000000e+00> : vector<2x16xf32>
    %30 = vector.multi_reduction <add>, %29, %cst_31 [1] : vector<2x16x16xf32> to vector<2x16xf32>
    %c0_32 = arith.constant 0 : index
    %c0_33 = arith.constant 0 : index
    %31 = memref.load %arg2[%c0_32, %c0_33] : memref<4x4xf32, #tpu.memory_space<smem>>
    %32 = vector.broadcast %31 : f32 to vector<2x16xf32>
    %33 = arith.mulf %18, %32 : vector<2x16xf32>
    %c0_34 = arith.constant 0 : index
    %c1_35 = arith.constant 1 : index
    %34 = memref.load %arg2[%c0_34, %c1_35] : memref<4x4xf32, #tpu.memory_space<smem>>
    %35 = vector.broadcast %34 : f32 to vector<2x16xf32>
    %36 = arith.mulf %22, %35 : vector<2x16xf32>
    %37 = arith.addf %33, %36 : vector<2x16xf32>
    %c0_36 = arith.constant 0 : index
    %c2_37 = arith.constant 2 : index
    %38 = memref.load %arg2[%c0_36, %c2_37] : memref<4x4xf32, #tpu.memory_space<smem>>
    %39 = vector.broadcast %38 : f32 to vector<2x16xf32>
    %40 = arith.mulf %26, %39 : vector<2x16xf32>
    %41 = arith.addf %37, %40 : vector<2x16xf32>
    %c0_38 = arith.constant 0 : index
    %c3_39 = arith.constant 3 : index
    %42 = memref.load %arg2[%c0_38, %c3_39] : memref<4x4xf32, #tpu.memory_space<smem>>
    %43 = vector.broadcast %42 : f32 to vector<2x16xf32>
    %44 = arith.mulf %30, %43 : vector<2x16xf32>
    %45 = arith.addf %41, %44 : vector<2x16xf32>
    %c0_40 = arith.constant 0 : index
    %46 = memref.load %arg3[%c0_40] : memref<4xf32, #tpu.memory_space<smem>>
    %47 = vector.broadcast %46 : f32 to vector<2x16xf32>
    %48 = arith.addf %45, %47 : vector<2x16xf32>
    %c1_41 = arith.constant 1 : index
    %c0_42 = arith.constant 0 : index
    %49 = memref.load %arg2[%c1_41, %c0_42] : memref<4x4xf32, #tpu.memory_space<smem>>
    %50 = vector.broadcast %49 : f32 to vector<2x16xf32>
    %51 = arith.mulf %18, %50 : vector<2x16xf32>
    %c1_43 = arith.constant 1 : index
    %c1_44 = arith.constant 1 : index
    %52 = memref.load %arg2[%c1_43, %c1_44] : memref<4x4xf32, #tpu.memory_space<smem>>
    %53 = vector.broadcast %52 : f32 to vector<2x16xf32>
    %54 = arith.mulf %22, %53 : vector<2x16xf32>
    %55 = arith.addf %51, %54 : vector<2x16xf32>
    %c1_45 = arith.constant 1 : index
    %c2_46 = arith.constant 2 : index
    %56 = memref.load %arg2[%c1_45, %c2_46] : memref<4x4xf32, #tpu.memory_space<smem>>
    %57 = vector.broadcast %56 : f32 to vector<2x16xf32>
    %58 = arith.mulf %26, %57 : vector<2x16xf32>
    %59 = arith.addf %55, %58 : vector<2x16xf32>
    %c1_47 = arith.constant 1 : index
    %c3_48 = arith.constant 3 : index
    %60 = memref.load %arg2[%c1_47, %c3_48] : memref<4x4xf32, #tpu.memory_space<smem>>
    %61 = vector.broadcast %60 : f32 to vector<2x16xf32>
    %62 = arith.mulf %30, %61 : vector<2x16xf32>
    %63 = arith.addf %59, %62 : vector<2x16xf32>
    %c1_49 = arith.constant 1 : index
    %64 = memref.load %arg3[%c1_49] : memref<4xf32, #tpu.memory_space<smem>>
    %65 = vector.broadcast %64 : f32 to vector<2x16xf32>
    %66 = arith.addf %63, %65 : vector<2x16xf32>
    %c2_50 = arith.constant 2 : index
    %c0_51 = arith.constant 0 : index
    %67 = memref.load %arg2[%c2_50, %c0_51] : memref<4x4xf32, #tpu.memory_space<smem>>
    %68 = vector.broadcast %67 : f32 to vector<2x16xf32>
    %69 = arith.mulf %18, %68 : vector<2x16xf32>
    %c2_52 = arith.constant 2 : index
    %c1_53 = arith.constant 1 : index
    %70 = memref.load %arg2[%c2_52, %c1_53] : memref<4x4xf32, #tpu.memory_space<smem>>
    %71 = vector.broadcast %70 : f32 to vector<2x16xf32>
    %72 = arith.mulf %22, %71 : vector<2x16xf32>
    %73 = arith.addf %69, %72 : vector<2x16xf32>
    %c2_54 = arith.constant 2 : index
    %c2_55 = arith.constant 2 : index
    %74 = memref.load %arg2[%c2_54, %c2_55] : memref<4x4xf32, #tpu.memory_space<smem>>
    %75 = vector.broadcast %74 : f32 to vector<2x16xf32>
    %76 = arith.mulf %26, %75 : vector<2x16xf32>
    %77 = arith.addf %73, %76 : vector<2x16xf32>
    %c2_56 = arith.constant 2 : index
    %c3_57 = arith.constant 3 : index
    %78 = memref.load %arg2[%c2_56, %c3_57] : memref<4x4xf32, #tpu.memory_space<smem>>
    %79 = vector.broadcast %78 : f32 to vector<2x16xf32>
    %80 = arith.mulf %30, %79 : vector<2x16xf32>
    %81 = arith.addf %77, %80 : vector<2x16xf32>
    %c2_58 = arith.constant 2 : index
    %82 = memref.load %arg3[%c2_58] : memref<4xf32, #tpu.memory_space<smem>>
    %83 = vector.broadcast %82 : f32 to vector<2x16xf32>
    %84 = arith.addf %81, %83 : vector<2x16xf32>
    %c3_59 = arith.constant 3 : index
    %c0_60 = arith.constant 0 : index
    %85 = memref.load %arg2[%c3_59, %c0_60] : memref<4x4xf32, #tpu.memory_space<smem>>
    %86 = vector.broadcast %85 : f32 to vector<2x16xf32>
    %87 = arith.mulf %18, %86 : vector<2x16xf32>
    %c3_61 = arith.constant 3 : index
    %c1_62 = arith.constant 1 : index
    %88 = memref.load %arg2[%c3_61, %c1_62] : memref<4x4xf32, #tpu.memory_space<smem>>
    %89 = vector.broadcast %88 : f32 to vector<2x16xf32>
    %90 = arith.mulf %22, %89 : vector<2x16xf32>
    %91 = arith.addf %87, %90 : vector<2x16xf32>
    %c3_63 = arith.constant 3 : index
    %c2_64 = arith.constant 2 : index
    %92 = memref.load %arg2[%c3_63, %c2_64] : memref<4x4xf32, #tpu.memory_space<smem>>
    %93 = vector.broadcast %92 : f32 to vector<2x16xf32>
    %94 = arith.mulf %26, %93 : vector<2x16xf32>
    %95 = arith.addf %91, %94 : vector<2x16xf32>
    %c3_65 = arith.constant 3 : index
    %c3_66 = arith.constant 3 : index
    %96 = memref.load %arg2[%c3_65, %c3_66] : memref<4x4xf32, #tpu.memory_space<smem>>
    %97 = vector.broadcast %96 : f32 to vector<2x16xf32>
    %98 = arith.mulf %30, %97 : vector<2x16xf32>
    %99 = arith.addf %95, %98 : vector<2x16xf32>
    %c3_67 = arith.constant 3 : index
    %100 = memref.load %arg3[%c3_67] : memref<4xf32, #tpu.memory_space<smem>>
    %101 = vector.broadcast %100 : f32 to vector<2x16xf32>
    %102 = arith.addf %99, %101 : vector<2x16xf32>
    %103 = tpu.concatenate %48, %66, %84, %102 in 1 : vector<2x16xf32>, vector<2x16xf32>, vector<2x16xf32>, vector<2x16xf32> -> vector<2x64xf32>
    %c0_68 = arith.constant 0 : index
    %c0_69 = arith.constant 0 : index
    %c0_70 = arith.constant 0 : index
    %104 = vector.load %arg4[%c0_68, %c0_69, %c0_70] : memref<2x1x64xf32, #tpu.memory_space<vmem>>, vector<2x1x64xf32>
    %105 = vector.shape_cast %104 : vector<2x1x64xf32> to vector<2x64xf32>
    %106 = vector.shape_cast %103 : vector<2x64xf32> to vector<2x1x64xf32>
    tpu.vector_store %arg4[%c0_68, %c0_69, %c0_70], %106 {strides = array<i32>} : memref<2x1x64xf32, #tpu.memory_space<vmem>>, vector<2x1x64xf32>,
    return
  }
  func.func @transform_0(%arg0: i32) -> (i32, i32, i32, i32) {
    %c0_i32 = arith.constant 0 : i32
    %c0_i32_0 = arith.constant 0 : i32
    %c0_i32_1 = arith.constant 0 : i32
    %c0_i32_2 = arith.constant 0 : i32
    return %arg0, %c0_i32, %c0_i32_0, %c0_i32_1 : i32, i32, i32, i32
  }
  func.func @transform_1(%arg0: i32) -> (i32, i32) {
    %c0_i32 = arith.constant 0 : i32
    %c0_i32_0 = arith.constant 0 : i32
    %c0_i32_1 = arith.constant 0 : i32
    return %c0_i32, %c0_i32_0 : i32, i32
  }
  func.func @transform_2(%arg0: i32) -> i32 {
    %c0_i32 = arith.constant 0 : i32
    %c0_i32_0 = arith.constant 0 : i32
    return %c0_i32 : i32
  }
  func.func @transform_3(%arg0: i32) -> (i32, i32, i32) {
    %c0_i32 = arith.constant 0 : i32
    %c0_i32_0 = arith.constant 0 : i32
    %c0_i32_1 = arith.constant 0 : i32
    return %arg0, %c0_i32, %c0_i32_0 : i32, i32, i32
  }
}

</mosaic_0001>

<llo_original>
// kernel: tpu_custom_call.1
$region0: #{tpu_custom_call.1}
  #allocation0 [shape = 'u32[]', space=smem, size = 0x4, offset = 0x4, fixed_abs, tag = 'smem constant byte address 0x4 - core index']
  #allocation1 [shape = 'u32[144,128]{1,0:T(1,128)}', space=vmem, size = 0x12000, scoped, tag = 'internal scratch']
  %s0 = inlined_call_operand.hbm [shape: f32[2,4,16,16], index: 0, kind: input, shape index: {}]
  %s1 = inlined_call_operand.hbm [shape: f32[4,4], index: 1, kind: input, shape index: {}]
  %s2 = inlined_call_operand.vmem [shape: f32[4], index: 2, kind: input, shape index: {}]
  %s3 = inlined_call_operand.hbm [shape: f32[2,1,64], index: 3, kind: output, shape index: {}]
  %s4 = sld [smem:[#allocation0]]
  $region34: #{tpu_custom_call.1} parent=0
    _
  %s6 = ssub.s32 1, %s4
  %s7 = scalar_select 0, %s6, %s4
  $region1: #{tpu_custom_call.1} parent=0
    #allocation2 [shape = 'u8[65536]{0}', space=vmem, size = 0x10000, scoped, tag = 'input window, operand 0, single buffered']
    #allocation3 [shape = 's32[1]{0}', space=sflag, size = 0x4, scoped, tag = 'scoped memory for tpu_custom_call.1']
    #allocation4 [shape = 's32[1]{0}', space=sflag, size = 0x4, scoped, tag = 'scoped memory for tpu_custom_call.1']
    #allocation5 [shape = 's32[1]{0}', space=sflag, size = 0x4, scoped, tag = 'scoped memory for tpu_custom_call.1']
    #allocation6 [shape = 's32[1]{0}', space=sflag, size = 0x4, scoped, tag = 'scoped memory for tpu_custom_call.1']
    #allocation7 [shape = 'u8[2048]{0}', space=smem, size = 0x800, scoped, tag = 'input window, operand 1, single buffered']
    #allocation8 [shape = 'u8[512]{0}', space=smem, size = 0x200, scoped, tag = 'input window, operand 2, single buffered']
    #allocation9 [shape = 'u8[1024]{0}', space=vmem, size = 0x400, scoped, tag = 'output window, operand 0, single buffered']
    %8 = vsyncpa [#allocation3], 0
    %9 = vsyncpa [#allocation5], 0
    %10 = vsyncpa [#allocation6], 0
    %11 = vsyncpa [#allocation4], 0
    // Predicated region
    $region2: #{tpu_custom_call.1} parent=1 // pred_check
      _
    $region3: #{tpu_custom_call.1} parent=1 // pred_check_branch
      %13 = sbr.rel (0) target = $region5
    $region4: #{tpu_custom_call.1} parent=1 // pred_region
      %s15 = ssub.s32 2048, 2048
      %16 = vsyncadd [#allocation3], %s15
      %s17 = sshll.u32 [#allocation2], 4
      %s18 = int_to_ptr.vmem [resolvable:$true] %s17
      %23 = dma.hbm_to_vmem [thread:$0]  %s0, 2048, %s18, [#allocation3], 128, 128, 8
    $region5: #{tpu_custom_call.1} parent=1 // pred_fallthru
      _
    // Predicated region
    $region6: #{tpu_custom_call.1} parent=1 // pred_check
      _
    $region7: #{tpu_custom_call.1} parent=1 // pred_check_branch
      %25 = sbr.rel (0) target = $region9
    $region8: #{tpu_custom_call.1} parent=1 // pred_region
      %s27 = ssub.s32 64, 64
      %28 = vsyncadd [#allocation5], %s27
      %31 = dma.hbm_to_smem %s1, 64, [#allocation7], [#allocation5]
    $region9: #{tpu_custom_call.1} parent=1 // pred_fallthru
      _
    // Predicated region
    $region10: #{tpu_custom_call.1} parent=1 // pred_check
      _
    $region11: #{tpu_custom_call.1} parent=1 // pred_check_branch
      %33 = sbr.rel (0) target = $region13
    $region12: #{tpu_custom_call.1} parent=1 // pred_region
      %s35 = ssub.s32 16, 16
      %36 = vsyncadd [#allocation6], %s35
      %s38 = sshll.u32 %s2, 4
      %s39 = int_to_ptr.vmem [resolvable:$true] %s38
      %41 = dma.vmem_to_smem %s39, 16, [#allocation8], [#allocation6]
    $region13: #{tpu_custom_call.1} parent=1 // pred_fallthru
      _
    // Predicated region
    $region14: #{tpu_custom_call.1} parent=1 // pred_check
      _
    $region15: #{tpu_custom_call.1} parent=1 // pred_check_branch
      %43 = sbr.rel (0) target = $region17
    $region16: #{tpu_custom_call.1} parent=1 // pred_region
      %44 = dma.done [#allocation3], 2048
    $region17: #{tpu_custom_call.1} parent=1 // pred_fallthru
      _
    // Predicated region
    $region18: #{tpu_custom_call.1} parent=1 // pred_check
      _
    $region19: #{tpu_custom_call.1} parent=1 // pred_check_branch
      %46 = sbr.rel (0) target = $region21
    $region20: #{tpu_custom_call.1} parent=1 // pred_region
      %47 = dma.done [#allocation5], 64
    $region21: #{tpu_custom_call.1} parent=1 // pred_fallthru
      _
    // Predicated region
    $region22: #{tpu_custom_call.1} parent=1 // pred_check
      _
    $region23: #{tpu_custom_call.1} parent=1 // pred_check_branch
      %49 = sbr.rel (0) target = $region25
    $region24: #{tpu_custom_call.1} parent=1 // pred_region
      %50 = dma.done [#allocation6], 16
    $region25: #{tpu_custom_call.1} parent=1 // pred_fallthru
      _
    %51 = sfence
    %v52 = vld [vmem:[#allocation2] sm:$0xff]
    %v53 = vld [vmem:[#allocation2 + $0x8] sm:$0xff]
    %v54 = vld [vmem:[#allocation2 + $0x40] sm:$0xff]
    %v55 = vld [vmem:[#allocation2 + $0x48] sm:$0xff]
    %s56 = scalar_lea.vmem [#allocation2], 16
    %v57 = vld [vmem:[%s56] sm:$0xff]
    %v58 = vld [vmem:[%s56 + $0x8] sm:$0xff]
    %v59 = vld [vmem:[%s56 + $0x40] sm:$0xff]
    %v60 = vld [vmem:[%s56 + $0x48] sm:$0xff]
    %v61 = vmax.f32 %v52, %v57
    %v62 = vmax.f32 %v53, %v58
    %v63 = vmax.f32 %v54, %v59
    %v64 = vmax.f32 %v55, %v60
    %s65 = scalar_lea.vmem [#allocation2], 32
    %v66 = vld [vmem:[%s65] sm:$0xff]
    %v67 = vld [vmem:[%s65 + $0x8] sm:$0xff]
    %v68 = vld [vmem:[%s65 + $0x40] sm:$0xff]
    %v69 = vld [vmem:[%s65 + $0x48] sm:$0xff]
    %v70 = vmax.f32 %v61, %v66
    %v71 = vmax.f32 %v62, %v67
    %v72 = vmax.f32 %v63, %v68
    %v73 = vmax.f32 %v64, %v69
    %s74 = scalar_lea.vmem [#allocation2], 48
    %v75 = vld [vmem:[%s74] sm:$0xff]
    %v76 = vld [vmem:[%s74 + $0x8] sm:$0xff]
    %v77 = vld [vmem:[%s74 + $0x40] sm:$0xff]
    %v78 = vld [vmem:[%s74 + $0x48] sm:$0xff]
    %v79 = vmax.f32 %v70, %v75
    %v80 = vmax.f32 %v71, %v76
    %v81 = vmax.f32 %v72, %v77
    %v82 = vmax.f32 %v73, %v78
    %v83 = vtanh.pop %v79
    %v84 = vtanh.pop %v80
    %v85 = vtanh.pop %v81
    %v86 = vtanh.pop %v82
    %v87 = vmax.f32 %v83, 0.0
    %v88 = vmax.f32 %v84, 0.0
    %v89 = vmax.f32 %v85, 0.0
    %v90 = vmax.f32 %v86, 0.0
    %91 = vxpose.xlu0.b32.start [1/16] %v87, 128
    %92 = vxpose.xlu0.b32.cont [2/16] %v88, 128
    %93 = vxpose.xlu0.b32.cont [3/16] 0.0, 128
    %94 = vxpose.xlu0.b32.cont [4/16] 0.0, 128
    %95 = vxpose.xlu0.b32.cont [5/16] 0.0, 128
    %96 = vxpose.xlu0.b32.cont [6/16] 0.0, 128
    %97 = vxpose.xlu0.b32.cont [7/16] 0.0, 128
    %98 = vxpose.xlu0.b32.cont [8/16] 0.0, 128
    %99 = vxpose.xlu0.b32.cont [9/16] 0.0, 128
    %100 = vxpose.xlu0.b32.cont [10/16] 0.0, 128
    %101 = vxpose.xlu0.b32.cont [11/16] 0.0, 128
    %102 = vxpose.xlu0.b32.cont [12/16] 0.0, 128
    %103 = vxpose.xlu0.b32.cont [13/16] 0.0, 128
    %104 = vxpose.xlu0.b32.cont [14/16] 0.0, 128
    %105 = vxpose.xlu0.b32.cont [15/16] 0.0, 128
    %106 = vxpose.xlu0.b32.end [16/16] 0.0, 128
    %v107 = vpop.trf.xlu0
    %v108 = vpop.trf.xlu0
    %v109 = vpop.trf.xlu0
    %v110 = vpop.trf.xlu0
    %v111 = vpop.trf.xlu0
    %v112 = vpop.trf.xlu0
    %v113 = vpop.trf.xlu0
    %v114 = vpop.trf.xlu0
    %v115 = vpop.trf.xlu0
    %v116 = vpop.trf.xlu0
    %v117 = vpop.trf.xlu0
    %v118 = vpop.trf.xlu0
    %v119 = vpop.trf.xlu0
    %v120 = vpop.trf.xlu0
    %v121 = vpop.trf.xlu0
    %v122 = vpop.trf.xlu0
    %123 = vxpose.xlu0.b32.start [1/16] %v89, 128
    %124 = vxpose.xlu0.b32.cont [2/16] %v90, 128
    %125 = vxpose.xlu0.b32.cont [3/16] 0.0, 128
    %126 = vxpose.xlu0.b32.cont [4/16] 0.0, 128
    %127 = vxpose.xlu0.b32.cont [5/16] 0.0, 128
    %128 = vxpose.xlu0.b32.cont [6/16] 0.0, 128
    %129 = vxpose.xlu0.b32.cont [7/16] 0.0, 128
    %130 = vxpose.xlu0.b32.cont [8/16] 0.0, 128
    %131 = vxpose.xlu0.b32.cont [9/16] 0.0, 128
    %132 = vxpose.xlu0.b32.cont [10/16] 0.0, 128
    %133 = vxpose.xlu0.b32.cont [11/16] 0.0, 128
    %134 = vxpose.xlu0.b32.cont [12/16] 0.0, 128
    %135 = vxpose.xlu0.b32.cont [13/16] 0.0, 128
    %136 = vxpose.xlu0.b32.cont [14/16] 0.0, 128
    %137 = vxpose.xlu0.b32.cont [15/16] 0.0, 128
    %138 = vxpose.xlu0.b32.end [16/16] 0.0, 128
    %v139 = vpop.trf.xlu0
    %v140 = vpop.trf.xlu0
    %v141 = vpop.trf.xlu0
    %v142 = vpop.trf.xlu0
    %v143 = vpop.trf.xlu0
    %v144 = vpop.trf.xlu0
    %v145 = vpop.trf.xlu0
    %v146 = vpop.trf.xlu0
    %v147 = vpop.trf.xlu0
    %v148 = vpop.trf.xlu0
    %v149 = vpop.trf.xlu0
    %v150 = vpop.trf.xlu0
    %v151 = vpop.trf.xlu0
    %v152 = vpop.trf.xlu0
    %v153 = vpop.trf.xlu0
    %v154 = vpop.trf.xlu0
    %v155 = vmul.f32 %v52, %v107
    %v156 = vmul.f32 %v53, %v108
    %v157 = vmul.f32 %v54, %v139
    %v158 = vmul.f32 %v55, %v140
    %vm159 = vcmask 130048
    %v160 = vsel %vm159, %v155, 0.0
    %v161 = vsel %vm159, %v156, 0.0
    %v162 = vadd.f32 %v160, %v161
    %v163 = vrot.slane %v162, 4
    %v164 = vadd.f32 %v162, %v163
    %v165 = vrot.slane %v164, 2
    %v166 = vadd.f32 %v164, %v165
    %v167 = vrot.slane %v166, 1
    %v168 = vadd.f32 %v166, %v167
    %v169 = vsel %vm159, %v157, 0.0
    %v170 = vsel %vm159, %v158, 0.0
    %v171 = vadd.f32 %v169, %v170
    %v172 = vrot.slane %v171, 4
    %v173 = vadd.f32 %v171, %v172
    %v174 = vrot.slane %v173, 2
    %v175 = vadd.f32 %v173, %v174
    %v176 = vrot.slane %v175, 1
    %v177 = vadd.f32 %v175, %v176
    %v178 = vmul.f32 %v57, %v107
    %v179 = vmul.f32 %v58, %v108
    %v180 = vmul.f32 %v59, %v139
    %v181 = vmul.f32 %v60, %v140
    %v182 = vsel %vm159, %v178, 0.0
    %v183 = vsel %vm159, %v179, 0.0
    %v184 = vadd.f32 %v182, %v183
    %v185 = vrot.slane %v184, 4
    %v186 = vadd.f32 %v184, %v185
    %v187 = vrot.slane %v186, 2
    %v188 = vadd.f32 %v186, %v187
    %v189 = vrot.slane %v188, 1
    %v190 = vadd.f32 %v188, %v189
    %v191 = vsel %vm159, %v180, 0.0
    %v192 = vsel %vm159, %v181, 0.0
    %v193 = vadd.f32 %v191, %v192
    %v194 = vrot.slane %v193, 4
    %v195 = vadd.f32 %v193, %v194
    %v196 = vrot.slane %v195, 2
    %v197 = vadd.f32 %v195, %v196
    %v198 = vrot.slane %v197, 1
    %v199 = vadd.f32 %v197, %v198
    %v200 = vmul.f32 %v66, %v107
    %v201 = vmul.f32 %v67, %v108
    %v202 = vmul.f32 %v68, %v139
    %v203 = vmul.f32 %v69, %v140
    %v204 = vsel %vm159, %v200, 0.0
    %v205 = vsel %vm159, %v201, 0.0
    %v206 = vadd.f32 %v204, %v205
    %v207 = vrot.slane %v206, 4
    %v208 = vadd.f32 %v206, %v207
    %v209 = vrot.slane %v208, 2
    %v210 = vadd.f32 %v208, %v209
    %v211 = vrot.slane %v210, 1
    %v212 = vadd.f32 %v210, %v211
    %v213 = vsel %vm159, %v202, 0.0
    %v214 = vsel %vm159, %v203, 0.0
    %v215 = vadd.f32 %v213, %v214
    %v216 = vrot.slane %v215, 4
    %v217 = vadd.f32 %v215, %v216
    %v218 = vrot.slane %v217, 2
    %v219 = vadd.f32 %v217, %v218
    %v220 = vrot.slane %v219, 1
    %v221 = vadd.f32 %v219, %v220
    %v222 = vmul.f32 %v75, %v107
    %v223 = vmul.f32 %v76, %v108
    %v224 = vmul.f32 %v77, %v139
    %v225 = vmul.f32 %v78, %v140
    %v226 = vsel %vm159, %v222, 0.0
    %v227 = vsel %vm159, %v223, 0.0
    %v228 = vadd.f32 %v226, %v227
    %v229 = vrot.slane %v228, 4
    %v230 = vadd.f32 %v228, %v229
    %v231 = vrot.slane %v230, 2
    %v232 = vadd.f32 %v230, %v231
    %v233 = vrot.slane %v232, 1
    %v234 = vadd.f32 %v232, %v233
    %v235 = vsel %vm159, %v224, 0.0
    %v236 = vsel %vm159, %v225, 0.0
    %v237 = vadd.f32 %v235, %v236
    %v238 = vrot.slane %v237, 4
    %v239 = vadd.f32 %v237, %v238
    %v240 = vrot.slane %v239, 2
    %v241 = vadd.f32 %v239, %v240
    %v242 = vrot.slane %v241, 1
    %v243 = vadd.f32 %v241, %v242
    %s244 = sld [smem:[#allocation7]]
    %v245 = vstv %s244
    %v246 = vmul.f32 %v168, %v245
    %v247 = vmul.f32 %v177, %v245
    %s248 = sld [smem:[#allocation7 + $0x1]]
    %v249 = vstv %s248
    %v250 = vmul.f32 %v190, %v249
    %v251 = vmul.f32 %v199, %v249
    %v252 = vadd.f32 %v246, %v250
    %v253 = vadd.f32 %v247, %v251
    %s254 = sld [smem:[#allocation7 + $0x2]]
    %v255 = vstv %s254
    %v256 = vmul.f32 %v212, %v255
    %v257 = vmul.f32 %v221, %v255
    %v258 = vadd.f32 %v252, %v256
    %v259 = vadd.f32 %v253, %v257
    %s260 = sld [smem:[#allocation7 + $0x3]]
    %v261 = vstv %s260
    %v262 = vmul.f32 %v234, %v261
    %v263 = vmul.f32 %v243, %v261
    %v264 = vadd.f32 %v258, %v262
    %v265 = vadd.f32 %v259, %v263
    %s266 = sld [smem:[#allocation8]]
    %v267 = vstv %s266
    %v268 = vadd.f32 %v264, %v267
    %v269 = vadd.f32 %v265, %v267
    %s270 = sld [smem:[#allocation7 + $0x80]]
    %v271 = vstv %s270
    %v272 = vmul.f32 %v168, %v271
    %v273 = vmul.f32 %v177, %v271
    %s274 = sld [smem:[#allocation7 + $0x81]]
    %v275 = vstv %s274
    %v276 = vmul.f32 %v190, %v275
    %v277 = vmul.f32 %v199, %v275
    %v278 = vadd.f32 %v272, %v276
    %v279 = vadd.f32 %v273, %v277
    %s280 = sld [smem:[#allocation7 + $0x82]]
    %v281 = vstv %s280
    %v282 = vmul.f32 %v212, %v281
    %v283 = vmul.f32 %v221, %v281
    %v284 = vadd.f32 %v278, %v282
    %v285 = vadd.f32 %v279, %v283
    %s286 = sld [smem:[#allocation7 + $0x83]]
    %v287 = vstv %s286
    %v288 = vmul.f32 %v234, %v287
    %v289 = vmul.f32 %v243, %v287
    %v290 = vadd.f32 %v284, %v288
    %v291 = vadd.f32 %v285, %v289
    %s292 = sld [smem:[#allocation8 + $0x1]]
    %v293 = vstv %s292
    %v294 = vadd.f32 %v290, %v293
    %v295 = vadd.f32 %v291, %v293
    %s296 = sld [smem:[#allocation7 + $0x100]]
    %v297 = vstv %s296
    %v298 = vmul.f32 %v168, %v297
    %v299 = vmul.f32 %v177, %v297
    %s300 = sld [smem:[#allocation7 + $0x101]]
    %v301 = vstv %s300
    %v302 = vmul.f32 %v190, %v301
    %v303 = vmul.f32 %v199, %v301
    %v304 = vadd.f32 %v298, %v302
    %v305 = vadd.f32 %v299, %v303
    %s306 = sld [smem:[#allocation7 + $0x102]]
    %v307 = vstv %s306
    %v308 = vmul.f32 %v212, %v307
    %v309 = vmul.f32 %v221, %v307
    %v310 = vadd.f32 %v304, %v308
    %v311 = vadd.f32 %v305, %v309
    %s312 = sld [smem:[#allocation7 + $0x103]]
    %v313 = vstv %s312
    %v314 = vmul.f32 %v234, %v313
    %v315 = vmul.f32 %v243, %v313
    %v316 = vadd.f32 %v310, %v314
    %v317 = vadd.f32 %v311, %v315
    %s318 = sld [smem:[#allocation8 + $0x2]]
    %v319 = vstv %s318
    %v320 = vadd.f32 %v316, %v319
    %v321 = vadd.f32 %v317, %v319
    %s322 = sld [smem:[#allocation7 + $0x180]]
    %v323 = vstv %s322
    %v324 = vmul.f32 %v168, %v323
    %v325 = vmul.f32 %v177, %v323
    %s326 = sld [smem:[#allocation7 + $0x181]]
    %v327 = vstv %s326
    %v328 = vmul.f32 %v190, %v327
    %v329 = vmul.f32 %v199, %v327
    %v330 = vadd.f32 %v324, %v328
    %v331 = vadd.f32 %v325, %v329
    %s332 = sld [smem:[#allocation7 + $0x182]]
    %v333 = vstv %s332
    %v334 = vmul.f32 %v212, %v333
    %v335 = vmul.f32 %v221, %v333
    %v336 = vadd.f32 %v330, %v334
    %v337 = vadd.f32 %v331, %v335
    %s338 = sld [smem:[#allocation7 + $0x183]]
    %v339 = vstv %s338
    %v340 = vmul.f32 %v234, %v339
    %v341 = vmul.f32 %v243, %v339
    %v342 = vadd.f32 %v336, %v340
    %v343 = vadd.f32 %v337, %v341
    %s344 = sld [smem:[#allocation8 + $0x3]]
    %v345 = vstv %s344
    %v346 = vadd.f32 %v342, %v345
    %v347 = vadd.f32 %v343, %v345
    %vm350 = vcmask 1041409
    %v351 = vsel %vm350, %v269, %v268
    %v355 = vsel %vm350, %v295, %v294
    %356 = vrot.lane.b32.xlu0 %v355, 16
    %v357 = vpop.permute.xlu0 %356
    %v361 = vsel %vm350, %v321, %v320
    %362 = vrot.lane.b32.xlu0 %v361, 32
    %v363 = vpop.permute.xlu0 %362
    %v367 = vsel %vm350, %v347, %v346
    %368 = vrot.lane.b32.xlu0 %v367, 48
    %v369 = vpop.permute.xlu0 %368
    %v371 = vsel %vm159, %v351, %v357
    %vm372 = vcmask 261120
    %v373 = vsel %vm372, %v371, %v363
    %vm374 = vcmask 392192
    %v375 = vsel %vm374, %v373, %v369
    %v378 = vunpack.c.l.s4 1966171168
    %v379 = vunpack.c.0.s8 %v378
    %v380 = vlaneseq
    %v381 = vshrl.u32 %v380, 7
    %v382 = vsub.s32 %v379, %v381
    %v383 = vrot.slane %v375, %v382
    %v384 = vcombine.high %v383, %v383
    %v386 = vunpack.c.l.s4 1966171168
    %v387 = vunpack.c.0.s8 %v386
    %v388 = vlaneseq
    %v389 = vshrl.u32 %v388, 7
    %v390 = vsub.s32 %v387, %v389
    %v391 = vrot.slane %v383, %v390
    %v393 = vunpack.c.l.s4 1966171168
    %v394 = vunpack.c.0.s8 %v393
    %v395 = vlaneseq
    %v396 = vshrl.u32 %v395, 7
    %v397 = vsub.s32 %v394, %v396
    %v398 = vrot.slane %v384, %v397
    %vm401 = vcmask 516096
    %402 = vst.msk [vmem:[#allocation9] sm:$0x1] %vm401, %v391
    %403 = vst.msk [vmem:[#allocation9 + $0x1] sm:$0x1] %vm401, %v398
    // Predicated region
    $region26: #{tpu_custom_call.1} parent=1 // pred_check
      _
    $region27: #{tpu_custom_call.1} parent=1 // pred_check_branch
      %405 = sbr.rel (0) target = $region29
    $region28: #{tpu_custom_call.1} parent=1 // pred_region
      %s407 = ssub.s32 32, 32
      %408 = vsyncadd [#allocation4], %s407
      %s409 = sshll.u32 [#allocation9], 4
      %s410 = int_to_ptr.vmem [resolvable:$true] %s409
      %415 = dma.vmem_to_hbm [thread:$0]  %s410, 32, %s3, [#allocation4], 16, 16, 1
    $region29: #{tpu_custom_call.1} parent=1 // pred_fallthru
      _
    // Predicated region
    $region30: #{tpu_custom_call.1} parent=1 // pred_check
      _
    $region31: #{tpu_custom_call.1} parent=1 // pred_check_branch
      %417 = sbr.rel (0) target = $region33
    $region32: #{tpu_custom_call.1} parent=1 // pred_region
      %418 = dma.done [#allocation4], 32
    $region33: #{tpu_custom_call.1} parent=1 // pred_fallthru
      _
    %419 = vsyncpa [#allocation3], 1
    %420 = vsyncpa [#allocation4], 1
    %421 = vsyncpa [#allocation5], 1
    %422 = vsyncpa [#allocation6], 1

</llo_original>
